<compile_context>
chip_gen: v7x
topology: tpu7x:2x2x1
jax: 0.10.0
libtpu: 0.0.40
codegen_flags: <defaults>
</compile_context>

<pallas_src>
import jax
import jax.numpy as jnp
from jax.experimental import pallas as pl
from jax.experimental.pallas import tpu as pltpu

# JAMMER_PPO_NETWORK_INPUT_SIZE is an external constant in the source repo;
# pick a small deterministic value consistent with a flat feature vector.
JAMMER_PPO_NETWORK_INPUT_SIZE = 16
HIDDEN1 = 128
HIDDEN2 = 64
OUTPUT = 1


def _round_up(x, m):
    return ((x + m - 1) // m) * m


def critic_kernel(x_ref, w1_ref, b1_ref, w2_ref, b2_ref, w3_ref, b3_ref, o_ref):
    # fc1 + relu  (dropout1 == identity at inference).  Accumulate in f32.
    x = x_ref[...]
    h1 = jnp.dot(x, w1_ref[...], preferred_element_type=jnp.float32)
    h1 = jnp.maximum(h1 + b1_ref[...].astype(jnp.float32), 0.0)

    # fc2 + relu  (dropout2 == identity at inference).
    h2 = jnp.dot(h1.astype(w2_ref.dtype), w2_ref[...],
                 preferred_element_type=jnp.float32)
    h2 = jnp.maximum(h2 + b2_ref[...].astype(jnp.float32), 0.0)

    # fc3 value head (N=1): VPU multiply + lane reduction instead of a
    # 1-output-lane MXU matmul; b3 is an SMEM scalar.
    w3_row = w3_ref[...].astype(jnp.float32)                      # [1, HIDDEN2]
    val = jnp.sum(h2 * w3_row, axis=-1, keepdims=True) + b3_ref[0, 0]
    # NOTE: OUTPUT=1 means this store is a masked partial store; bytes are tiny
    # so it is not worth re-layouting the output for realistic B.
    o_ref[...] = val.astype(o_ref.dtype)


def jammer_ppo_genie_critic(x, params, *, block_batch=128,
                            param_dtype=jnp.float32):
    """x: [B, input_size] float32 -> [B, 1] float32.

    block_batch: rows of x processed per grid step (kept <= 256 to avoid
    vreg spills of the [TM, 128] f32 hidden activation).
    param_dtype: dtype weights (and x) are cast to at the kernel boundary;
    bfloat16 halves the DMA bytes while accumulation stays in f32.
    """
    w1, b1, w2, b2, w3, b3 = params
    B = x.shape[0]
    in_size = x.shape[1]

    # Batch tile: multiple of 8 (sublane), capped by block_batch.
    tm = min(block_batch, max(8, _round_up(B, 8)))
    tm = _round_up(tm, 8)
    b_pad = _round_up(B, tm)
    if b_pad != B:
        x = jnp.pad(x, ((0, b_pad - B), (0, 0)))

    # Cast the streamed operands; biases stay f32 (elementwise path is f32
    # everywhere, which also keeps v5e's non-bf16 VPU happy).
    x_c = x.astype(param_dtype)
    w1_c = w1.astype(param_dtype)
    w2_c = w2.astype(param_dtype)
    w3_row = w3.reshape(1, HIDDEN2).astype(param_dtype)   # [1, 64] row for VPU
    b3_s = b3.reshape(1, 1).astype(jnp.float32)           # SMEM scalar

    grid = (b_pad // tm,)
    itemsize = jnp.dtype(param_dtype).itemsize
    flops = 2 * b_pad * (in_size * HIDDEN1 + HIDDEN1 * HIDDEN2 + HIDDEN2)
    bytes_accessed = (
        b_pad * in_size * itemsize                       # x
        + (in_size * HIDDEN1 + HIDDEN1 * HIDDEN2 + HIDDEN2) * itemsize  # weights
        + (HIDDEN1 + HIDDEN2 + 1) * 4                    # biases
        + b_pad * OUTPUT * 4                             # output
    )

    out = pl.pallas_call(
        critic_kernel,
        out_shape=jax.ShapeDtypeStruct((b_pad, OUTPUT), jnp.float32),
        grid=grid,
        in_specs=[
            # x tile: pipelined across the batch grid.
            pl.BlockSpec((tm, in_size), lambda i: (i, 0)),
            # Weights / biases: constant index_map -> resident in VMEM.
            pl.BlockSpec((in_size, HIDDEN1), lambda i: (0, 0)),
            pl.BlockSpec((1, HIDDEN1), lambda i: (0, 0)),
            pl.BlockSpec((HIDDEN1, HIDDEN2), lambda i: (0, 0)),
            pl.BlockSpec((1, HIDDEN2), lambda i: (0, 0)),
            pl.BlockSpec((1, HIDDEN2), lambda i: (0, 0)),
            # b3: single scalar in SMEM.
            pl.BlockSpec((1, 1), lambda i: (0, 0), memory_space=pltpu.SMEM),
        ],
        out_specs=pl.BlockSpec((tm, OUTPUT), lambda i: (i, 0)),
        compiler_params=pltpu.CompilerParams(
            dimension_semantics=("parallel",)),
        cost_estimate=pl.CostEstimate(
            flops=int(flops), transcendentals=0,
            bytes_accessed=int(bytes_accessed)),
    )(x_c, w1_c, b1, w2_c, b2, w3_row, b3_s)

    return out[:B]


def init_params(key):
    """Deterministic parameter init matching nn.Linear shapes.

    PyTorch stores W as [out, in]; we store the transpose [in, out] so the
    kernel computes x @ W + b directly. Biases are kept 2-D [1, out] for
    TPU-friendly broadcasting.
    """
    ks = jax.random.split(key, 6)

    def linear(kw, kb, fan_in, fan_out):
        bound = 1.0 / jnp.sqrt(fan_in)
        w = jax.random.uniform(kw, (fan_in, fan_out), jnp.float32, -bound, bound)
        b = jax.random.uniform(kb, (1, fan_out), jnp.float32, -bound, bound)
        return w, b

    w1, b1 = linear(ks[0], ks[1], JAMMER_PPO_NETWORK_INPUT_SIZE, HIDDEN1)
    w2, b2 = linear(ks[2], ks[3], HIDDEN1, HIDDEN2)
    w3, b3 = linear(ks[4], ks[5], HIDDEN2, OUTPUT)
    return (w1, b1, w2, b2, w3, b3)


def reference_forward(x, params):
    w1, b1, w2, b2, w3, b3 = params
    h1 = jnp.maximum(x @ w1 + b1, 0.0)
    h2 = jnp.maximum(h1 @ w2 + b2, 0.0)
    return h2 @ w3 + b3


if __name__ == "__main__":
    key = jax.random.PRNGKey(0)
    k_param, k_x = jax.random.split(key)

    params = init_params(k_param)
    B = 8
    x = jax.random.normal(k_x, (B, JAMMER_PPO_NETWORK_INPUT_SIZE), jnp.float32)
    ref = reference_forward(x, params)

    # f32 path (exact semantics of the PyTorch module in eval mode).
    out = jammer_ppo_genie_critic(x, params)
    out = jax.block_until_ready(out)
    assert out.shape == (B, OUTPUT), out.shape
    assert jnp.allclose(out, ref, atol=1e-4, rtol=1e-4), (out, ref)

    # bf16-weight path (halved DMA bytes, f32 accumulation) — looser tolerance.
    out_bf16 = jammer_ppo_genie_critic(x, params, param_dtype=jnp.bfloat16)
    out_bf16 = jax.block_until_ready(out_bf16)
    assert out_bf16.shape == (B, OUTPUT), out_bf16.shape
    assert jnp.allclose(out_bf16, ref, atol=5e-2, rtol=5e-2), (out_bf16, ref)

    # Exercise the batch-tiled grid (B not a multiple of the 128-row tile).
    x_big = jax.random.normal(k_x, (300, JAMMER_PPO_NETWORK_INPUT_SIZE),
                              jnp.float32)
    out_big = jax.block_until_ready(jammer_ppo_genie_critic(x_big, params))
    assert out_big.shape == (300, OUTPUT)
    assert jnp.allclose(out_big, reference_forward(x_big, params),
                        atol=1e-4, rtol=1e-4)

    print("KERNEL_OK")
</pallas_src>

<mosaic_0001>
module attributes {stable_mosaic.version = 11 : i64} {
  func.func @critic_kernel(%arg0: i32, %arg1: memref<8x16xf32, #tpu.memory_space<vmem>>, %arg2: memref<16x128xf32, #tpu.memory_space<vmem>>, %arg3: memref<1x128xf32, #tpu.memory_space<vmem>>, %arg4: memref<128x64xf32, #tpu.memory_space<vmem>>, %arg5: memref<1x64xf32, #tpu.memory_space<vmem>>, %arg6: memref<1x64xf32, #tpu.memory_space<vmem>>, %arg7: memref<1x1xf32, #tpu.memory_space<smem>>, %arg8: memref<8x1xf32, #tpu.memory_space<vmem>>) attributes {dimension_semantics = [#tpu.dimension_semantics<parallel>], iteration_bounds = array<i64: 1>, scalar_prefetch = 0 : i64, scratch_operands = 0 : i64, tpu.core_type = #tpu.core_type<tc>, window_params = [{transform_indices = @transform_0, window_bounds = array<i64: 8, 16>}, {pipeline_mode = #tpu.pipeline_mode<synchronous>, transform_indices = @transform_1, window_bounds = array<i64: 16, 128>}, {pipeline_mode = #tpu.pipeline_mode<synchronous>, transform_indices = @transform_2, window_bounds = array<i64: 1, 128>}, {pipeline_mode = #tpu.pipeline_mode<synchronous>, transform_indices = @transform_3, window_bounds = array<i64: 128, 64>}, {pipeline_mode = #tpu.pipeline_mode<synchronous>, transform_indices = @transform_4, window_bounds = array<i64: 1, 64>}, {pipeline_mode = #tpu.pipeline_mode<synchronous>, transform_indices = @transform_5, window_bounds = array<i64: 1, 64>}, {transform_indices = @transform_6, window_bounds = array<i64: 1, 1>}, {transform_indices = @transform_7, window_bounds = array<i64: 8, 1>}]} {
    %c0 = arith.constant 0 : index
    %c0_0 = arith.constant 0 : index
    %0 = vector.load %arg1[%c0, %c0_0] : memref<8x16xf32, #tpu.memory_space<vmem>>, vector<8x16xf32>
    %c0_1 = arith.constant 0 : index
    %c0_2 = arith.constant 0 : index
    %1 = vector.load %arg2[%c0_1, %c0_2] : memref<16x128xf32, #tpu.memory_space<vmem>>, vector<16x128xf32>
    %cst = arith.constant dense<0.000000e+00> : vector<8x128xf32>
    %2 = tpu.matmul %0, %1, %cst {dimension_numbers = #tpu.dot_dimension_numbers<[1], [0], [0], [1], [0, 0, 1, 1], [], []>} : vector<8x16xf32>, vector<16x128xf32>, vector<8x128xf32> -> vector<8x128xf32>
    %c0_3 = arith.constant 0 : index
    %c0_4 = arith.constant 0 : index
    %3 = vector.load %arg3[%c0_3, %c0_4] : memref<1x128xf32, #tpu.memory_space<vmem>>, vector<1x128xf32>
    %4 = vector.broadcast %3 : vector<1x128xf32> to vector<8x128xf32>
    %5 = arith.addf %2, %4 : vector<8x128xf32>
    %cst_5 = arith.constant 0.000000e+00 : f32
    %6 = vector.broadcast %cst_5 : f32 to vector<8x128xf32>
    %7 = arith.maximumf %5, %6 : vector<8x128xf32>
    %c0_6 = arith.constant 0 : index
    %c0_7 = arith.constant 0 : index
    %8 = vector.load %arg4[%c0_6, %c0_7] : memref<128x64xf32, #tpu.memory_space<vmem>>, vector<128x64xf32>
    %cst_8 = arith.constant dense<0.000000e+00> : vector<8x64xf32>
    %9 = tpu.matmul %7, %8, %cst_8 {dimension_numbers = #tpu.dot_dimension_numbers<[1], [0], [0], [1], [0, 0, 1, 1], [], []>} : vector<8x128xf32>, vector<128x64xf32>, vector<8x64xf32> -> vector<8x64xf32>
    %c0_9 = arith.constant 0 : index
    %c0_10 = arith.constant 0 : index
    %10 = vector.load %arg5[%c0_9, %c0_10] : memref<1x64xf32, #tpu.memory_space<vmem>>, vector<1x64xf32>
    %11 = vector.broadcast %10 : vector<1x64xf32> to vector<8x64xf32>
    %12 = arith.addf %9, %11 : vector<8x64xf32>
    %cst_11 = arith.constant 0.000000e+00 : f32
    %13 = vector.broadcast %cst_11 : f32 to vector<8x64xf32>
    %14 = arith.maximumf %12, %13 : vector<8x64xf32>
    %c0_12 = arith.constant 0 : index
    %c0_13 = arith.constant 0 : index
    %15 = vector.load %arg6[%c0_12, %c0_13] : memref<1x64xf32, #tpu.memory_space<vmem>>, vector<1x64xf32>
    %16 = vector.broadcast %15 : vector<1x64xf32> to vector<8x64xf32>
    %17 = arith.mulf %14, %16 : vector<8x64xf32>
    %cst_14 = arith.constant dense<0.000000e+00> : vector<8xf32>
    %18 = vector.multi_reduction <add>, %17, %cst_14 [1] : vector<8x64xf32> to vector<8xf32>
    %19 = vector.shape_cast %18 : vector<8xf32> to vector<8x1xf32>
    %c0_15 = arith.constant 0 : index
    %c0_16 = arith.constant 0 : index
    %20 = memref.load %arg7[%c0_15, %c0_16] : memref<1x1xf32, #tpu.memory_space<smem>>
    %21 = vector.broadcast %20 : f32 to vector<8x1xf32>
    %22 = arith.addf %19, %21 : vector<8x1xf32>
    %c0_17 = arith.constant 0 : index
    %c0_18 = arith.constant 0 : index
    %23 = vector.load %arg8[%c0_17, %c0_18] : memref<8x1xf32, #tpu.memory_space<vmem>>, vector<8x1xf32>
    tpu.vector_store %arg8[%c0_17, %c0_18], %22 {strides = array<i32>} : memref<8x1xf32, #tpu.memory_space<vmem>>, vector<8x1xf32>,
    return
  }
  func.func @transform_0(%arg0: i32) -> (i32, i32) {
    %c0_i32 = arith.constant 0 : i32
    %c0_i32_0 = arith.constant 0 : i32
    return %arg0, %c0_i32 : i32, i32
  }
  func.func @transform_1(%arg0: i32) -> (i32, i32) {
    %c0_i32 = arith.constant 0 : i32
    %c0_i32_0 = arith.constant 0 : i32
    %c0_i32_1 = arith.constant 0 : i32
    return %c0_i32, %c0_i32_0 : i32, i32
  }
  func.func @transform_2(%arg0: i32) -> (i32, i32) {
    %c0_i32 = arith.constant 0 : i32
    %c0_i32_0 = arith.constant 0 : i32
    %c0_i32_1 = arith.constant 0 : i32
    return %c0_i32, %c0_i32_0 : i32, i32
  }
  func.func @transform_3(%arg0: i32) -> (i32, i32) {
    %c0_i32 = arith.constant 0 : i32
    %c0_i32_0 = arith.constant 0 : i32
    %c0_i32_1 = arith.constant 0 : i32
    return %c0_i32, %c0_i32_0 : i32, i32
  }
  func.func @transform_4(%arg0: i32) -> (i32, i32) {
    %c0_i32 = arith.constant 0 : i32
    %c0_i32_0 = arith.constant 0 : i32
    %c0_i32_1 = arith.constant 0 : i32
    return %c0_i32, %c0_i32_0 : i32, i32
  }
  func.func @transform_5(%arg0: i32) -> (i32, i32) {
    %c0_i32 = arith.constant 0 : i32
    %c0_i32_0 = arith.constant 0 : i32
    %c0_i32_1 = arith.constant 0 : i32
    return %c0_i32, %c0_i32_0 : i32, i32
  }
  func.func @transform_6(%arg0: i32) -> (i32, i32) {
    %c0_i32 = arith.constant 0 : i32
    %c0_i32_0 = arith.constant 0 : i32
    %c0_i32_1 = arith.constant 0 : i32
    return %c0_i32, %c0_i32_0 : i32, i32
  }
  func.func @transform_7(%arg0: i32) -> (i32, i32) {
    %c0_i32 = arith.constant 0 : i32
    %c0_i32_0 = arith.constant 0 : i32
    return %arg0, %c0_i32 : i32, i32
  }
}

</mosaic_0001>

<llo_original>
// kernel: tpu_custom_call.1
$region0: #{tpu_custom_call.1}
  #allocation0 [shape = 'u32[]', space=smem, size = 0x4, offset = 0x4, fixed_abs, tag = 'smem constant byte address 0x4 - core index']
  #allocation1 [shape = 'u32[144,128]{1,0:T(1,128)}', space=vmem, size = 0x12000, scoped, tag = 'internal scratch']
  #allocation2 [shape = 'f32[1,1]{1,0:T(1,128)S(6)}', space=smem, size = 0x200, scoped, tag = 'scoped memory for tpu_custom_call.1']
  %s0 = inlined_call_operand.vmem [shape: f32[8,16], index: 0, kind: input, shape index: {}]
  %s1 = inlined_call_operand.vmem [shape: f32[16,128], index: 1, kind: input, shape index: {}]
  %s2 = inlined_call_operand.vmem [shape: f32[1,128], index: 2, kind: input, shape index: {}]
  %s3 = inlined_call_operand.vmem [shape: f32[128,64], index: 3, kind: input, shape index: {}]
  %s4 = inlined_call_operand.vmem [shape: f32[1,64], index: 4, kind: input, shape index: {}]
  %s5 = inlined_call_operand.vmem [shape: f32[1,64], index: 5, kind: input, shape index: {}]
  %s6 = inlined_call_operand.<no memory space> [shape: f32[1,1], index: 6, kind: input, shape index: {}]
  %s7 = inlined_call_operand.vmem [shape: f32[8,1], index: 7, kind: output, shape index: {}]
  %s8 = sld [smem:[#allocation0]]
  $region38: #{tpu_custom_call.1} parent=0
    _
  %s10 = ssub.s32 1, %s8
  %s11 = scalar_select 0, %s10, %s8
  %12 = sst [smem:[#allocation2]] %s6
  // Predicated region
  $region2: #{tpu_custom_call.1} parent=0 // pred_check
    _
  $region3: #{tpu_custom_call.1} parent=0 // pred_check_branch
    %14 = sbr.rel (0) target = $region5
  $region4: #{tpu_custom_call.1} parent=0 // pred_region
    _
  $region5: #{tpu_custom_call.1} parent=0 // pred_fallthru
    _
  // Predicated region
  $region6: #{tpu_custom_call.1} parent=0 // pred_check
    _
  $region7: #{tpu_custom_call.1} parent=0 // pred_check_branch
    %16 = sbr.rel (0) target = $region9
  $region8: #{tpu_custom_call.1} parent=0 // pred_region
    _
  $region9: #{tpu_custom_call.1} parent=0 // pred_fallthru
    _
  // Predicated region
  $region10: #{tpu_custom_call.1} parent=0 // pred_check
    _
  $region11: #{tpu_custom_call.1} parent=0 // pred_check_branch
    %18 = sbr.rel (0) target = $region13
  $region12: #{tpu_custom_call.1} parent=0 // pred_region
    _
  $region13: #{tpu_custom_call.1} parent=0 // pred_fallthru
    _
  // Predicated region
  $region14: #{tpu_custom_call.1} parent=0 // pred_check
    _
  $region15: #{tpu_custom_call.1} parent=0 // pred_check_branch
    %20 = sbr.rel (0) target = $region17
  $region16: #{tpu_custom_call.1} parent=0 // pred_region
    _
  $region17: #{tpu_custom_call.1} parent=0 // pred_fallthru
    _
  // Predicated region
  $region18: #{tpu_custom_call.1} parent=0 // pred_check
    _
  $region19: #{tpu_custom_call.1} parent=0 // pred_check_branch
    %22 = sbr.rel (0) target = $region21
  $region20: #{tpu_custom_call.1} parent=0 // pred_region
    _
  $region21: #{tpu_custom_call.1} parent=0 // pred_fallthru
    _
  // Predicated region
  $region22: #{tpu_custom_call.1} parent=0 // pred_check
    _
  $region23: #{tpu_custom_call.1} parent=0 // pred_check_branch
    %24 = sbr.rel (0) target = $region25
  $region24: #{tpu_custom_call.1} parent=0 // pred_region
    _
  $region25: #{tpu_custom_call.1} parent=0 // pred_fallthru
    _
  // Predicated region
  $region26: #{tpu_custom_call.1} parent=0 // pred_check
    _
  $region27: #{tpu_custom_call.1} parent=0 // pred_check_branch
    %26 = sbr.rel (0) target = $region29
  $region28: #{tpu_custom_call.1} parent=0 // pred_region
    _
  $region29: #{tpu_custom_call.1} parent=0 // pred_fallthru
    _
  %v27 = vld [vmem:[%s0] sm:$0xff]
  %v28 = vld [vmem:[%s1] sm:$0xff]
  %v29 = vld [vmem:[%s1 + $0x8] sm:$0xff]
  %v30 = vld [vmem:[%s2] sm:$0x1]
  %v32 = vlaneseq
  %v33 = vshrl.u32 %v32, 7
  %v34 = vsub.s32 0, %v33
  %v35 = vrot.slane %v30, %v34
  %vm37 = vcmask 130048
  %v39 = vsel %vm37, %v27, 0
  %41 = vmatprep.subr.mxu0 0.0
  %42 = vmatpush1.msra.mxu0 %v28
  %43 = vmatprep.subr.mxu0 0.0
  %44 = vmatpush1.msra.mxu0 %v29
  %45 = vmatprep.subr.mxu0 0.0
  %46 = vmatpush1.msra.mxu0 0.0
  %47 = vmatprep.subr.mxu0 0.0
  %48 = vmatpush1.msra.mxu0 0.0
  %49 = vmatprep.subr.mxu0 0.0
  %50 = vmatpush1.msra.mxu0 0.0
  %51 = vmatprep.subr.mxu0 0.0
  %52 = vmatpush1.msra.mxu0 0.0
  %53 = vmatprep.subr.mxu0 0.0
  %54 = vmatpush1.msra.mxu0 0.0
  %55 = vmatprep.subr.mxu0 0.0
  %56 = vmatpush1.msra.mxu0 0.0
  %57 = vmatprep.subr.mxu0 0.0
  %58 = vmatpush1.msra.mxu0 0.0
  %59 = vmatprep.subr.mxu0 0.0
  %60 = vmatpush1.msra.mxu0 0.0
  %61 = vmatprep.subr.mxu0 0.0
  %62 = vmatpush1.msra.mxu0 0.0
  %63 = vmatprep.subr.mxu0 0.0
  %64 = vmatpush1.msra.mxu0 0.0
  %65 = vmatprep.subr.mxu0 0.0
  %66 = vmatpush1.msra.mxu0 0.0
  %67 = vmatprep.subr.mxu0 0.0
  %68 = vmatpush1.msra.mxu0 0.0
  %69 = vmatprep.subr.mxu0 0.0
  %70 = vmatpush1.msra.mxu0 0.0
  %71 = vmatprep.subr.mxu0 0.0
  %72 = vmatpush1.msra.mxu0 0.0
  %73 = vmatprep.subr.mxu0 0.0
  %74 = vmatpush1.msra.mxu0 0.0
  %75 = vmatprep.subr.mxu0 0.0
  %76 = vmatpush1.msra.mxu0 0.0
  %77 = vmatprep.subr.mxu0 0.0
  %78 = vmatpush1.msra.mxu0 0.0
  %79 = vmatprep.subr.mxu0 0.0
  %80 = vmatpush1.msra.mxu0 0.0
  %81 = vmatprep.subr.mxu0 0.0
  %82 = vmatpush1.msra.mxu0 0.0
  %83 = vmatprep.subr.mxu0 0.0
  %84 = vmatpush1.msra.mxu0 0.0
  %85 = vmatprep.subr.mxu0 0.0
  %86 = vmatpush1.msra.mxu0 0.0
  %87 = vmatprep.subr.mxu0 0.0
  %88 = vmatpush1.msra.mxu0 0.0
  %89 = vmatprep.subr.mxu0 0.0
  %90 = vmatpush1.msra.mxu0 0.0
  %91 = vmatprep.subr.mxu0 0.0
  %92 = vmatpush1.msra.mxu0 0.0
  %93 = vmatprep.subr.mxu0 0.0
  %94 = vmatpush1.msra.mxu0 0.0
  %95 = vmatprep.subr.mxu0 0.0
  %96 = vmatpush1.msra.mxu0 0.0
  %97 = vmatprep.subr.mxu0 0.0
  %98 = vmatpush1.msra.mxu0 0.0
  %99 = vmatprep.subr.mxu0 0.0
  %100 = vmatpush1.msra.mxu0 0.0
  %101 = vmatprep.subr.mxu0 0.0
  %102 = vmatpush1.msra.mxu0 0.0
  %103 = vmatprep.subr.mxu0 0.0
  %104 = vmatpush1.msra.mxu0 0.0
  %105 = vmatprep.mubr.f32.mxu0 0.0
  %106 = vmatmul.mubr.f32.gmra.mrb[0].mxu0 %v39
  %v107 = vpop.f32.mrb[0].mxu0
  %v108 = vadd.f32 %v35, %v107
  %v109 = vpop.f32.mrb[0].mxu0
  %110 = vdwg.mxu0
  %v111 = vmax.f32 %v108, 0.0
  %v112 = vld [vmem:[%s3] sm:$0xff]
  %v113 = vld [vmem:[%s3 + $0x8] sm:$0xff]
  %v114 = vld [vmem:[%s3 + $0x10] sm:$0xff]
  %v115 = vld [vmem:[%s3 + $0x18] sm:$0xff]
  %v116 = vld [vmem:[%s3 + $0x20] sm:$0xff]
  %v117 = vld [vmem:[%s3 + $0x28] sm:$0xff]
  %v118 = vld [vmem:[%s3 + $0x30] sm:$0xff]
  %v119 = vld [vmem:[%s3 + $0x38] sm:$0xff]
  %v120 = vld [vmem:[%s3 + $0x40] sm:$0xff]
  %v121 = vld [vmem:[%s3 + $0x48] sm:$0xff]
  %v122 = vld [vmem:[%s3 + $0x50] sm:$0xff]
  %v123 = vld [vmem:[%s3 + $0x58] sm:$0xff]
  %v124 = vld [vmem:[%s3 + $0x60] sm:$0xff]
  %v125 = vld [vmem:[%s3 + $0x68] sm:$0xff]
  %v126 = vld [vmem:[%s3 + $0x70] sm:$0xff]
  %v127 = vld [vmem:[%s3 + $0x78] sm:$0xff]
  %v128 = vld [vmem:[%s4] sm:$0x1]
  %v130 = vlaneseq
  %v131 = vshrl.u32 %v130, 7
  %v132 = vsub.s32 0, %v131
  %v133 = vrot.slane %v128, %v132
  %135 = vmatprep.subr.mxu0 0.0
  %136 = vmatpush1.msra.mxu0 %v112
  %137 = vmatprep.subr.mxu0 0.0
  %138 = vmatpush1.msra.mxu0 %v113
  %139 = vmatprep.subr.mxu0 0.0
  %140 = vmatpush1.msra.mxu0 %v114
  %141 = vmatprep.subr.mxu0 0.0
  %142 = vmatpush1.msra.mxu0 %v115
  %143 = vmatprep.subr.mxu0 0.0
  %144 = vmatpush1.msra.mxu0 %v116
  %145 = vmatprep.subr.mxu0 0.0
  %146 = vmatpush1.msra.mxu0 %v117
  %147 = vmatprep.subr.mxu0 0.0
  %148 = vmatpush1.msra.mxu0 %v118
  %149 = vmatprep.subr.mxu0 0.0
  %150 = vmatpush1.msra.mxu0 %v119
  %151 = vmatprep.subr.mxu0 0.0
  %152 = vmatpush1.msra.mxu0 %v120
  %153 = vmatprep.subr.mxu0 0.0
  %154 = vmatpush1.msra.mxu0 %v121
  %155 = vmatprep.subr.mxu0 0.0
  %156 = vmatpush1.msra.mxu0 %v122
  %157 = vmatprep.subr.mxu0 0.0
  %158 = vmatpush1.msra.mxu0 %v123
  %159 = vmatprep.subr.mxu0 0.0
  %160 = vmatpush1.msra.mxu0 %v124
  %161 = vmatprep.subr.mxu0 0.0
  %162 = vmatpush1.msra.mxu0 %v125
  %163 = vmatprep.subr.mxu0 0.0
  %164 = vmatpush1.msra.mxu0 %v126
  %165 = vmatprep.subr.mxu0 0.0
  %166 = vmatpush1.msra.mxu0 %v127
  %167 = vmatprep.subr.mxu0 0.0
  %168 = vmatpush1.msra.mxu0 0.0
  %169 = vmatprep.subr.mxu0 0.0
  %170 = vmatpush1.msra.mxu0 0.0
  %171 = vmatprep.subr.mxu0 0.0
  %172 = vmatpush1.msra.mxu0 0.0
  %173 = vmatprep.subr.mxu0 0.0
  %174 = vmatpush1.msra.mxu0 0.0
  %175 = vmatprep.subr.mxu0 0.0
  %176 = vmatpush1.msra.mxu0 0.0
  %177 = vmatprep.subr.mxu0 0.0
  %178 = vmatpush1.msra.mxu0 0.0
  %179 = vmatprep.subr.mxu0 0.0
  %180 = vmatpush1.msra.mxu0 0.0
  %181 = vmatprep.subr.mxu0 0.0
  %182 = vmatpush1.msra.mxu0 0.0
  %183 = vmatprep.subr.mxu0 0.0
  %184 = vmatpush1.msra.mxu0 0.0
  %185 = vmatprep.subr.mxu0 0.0
  %186 = vmatpush1.msra.mxu0 0.0
  %187 = vmatprep.subr.mxu0 0.0
  %188 = vmatpush1.msra.mxu0 0.0
  %189 = vmatprep.subr.mxu0 0.0
  %190 = vmatpush1.msra.mxu0 0.0
  %191 = vmatprep.subr.mxu0 0.0
  %192 = vmatpush1.msra.mxu0 0.0
  %193 = vmatprep.subr.mxu0 0.0
  %194 = vmatpush1.msra.mxu0 0.0
  %195 = vmatprep.subr.mxu0 0.0
  %196 = vmatpush1.msra.mxu0 0.0
  %197 = vmatprep.subr.mxu0 0.0
  %198 = vmatpush1.msra.mxu0 0.0
  %199 = vmatprep.mubr.f32.mxu0 0.0
  %200 = vmatmul.mubr.f32.gmra.mrb[0].mxu0 %v111
  %v201 = vpop.f32.mrb[0].mxu0
  %v202 = vadd.f32 %v133, %v201
  %v203 = vpop.f32.mrb[0].mxu0
  %204 = vdwg.mxu0
  %v205 = vmax.f32 %v202, 0.0
  %v206 = vld [vmem:[%s5] sm:$0x1]
  %v208 = vlaneseq
  %v209 = vshrl.u32 %v208, 7
  %v210 = vsub.s32 0, %v209
  %v211 = vrot.slane %v206, %v210
  %v213 = vmul.f32 %v205, %v211
  %vm214 = vcmask 523264
  %v215 = vsel %vm214, %v213, 0.0
  %216 = vadd.xlane.f32.xlu0 %v215
  %v217 = vpop.xlane.xlu0 %216
  %s218 = sld [smem:[#allocation2]]
  %v219 = vstv %s218
  %v220 = vadd.f32 %v217, %v219
  %vm221 = vcmask 7168
  %222 = vst.msk [vmem:[%s7] sm:$0xff] %vm221, %v220
  // Predicated region
  $region30: #{tpu_custom_call.1} parent=0 // pred_check
    _
  $region31: #{tpu_custom_call.1} parent=0 // pred_check_branch
    %224 = sbr.rel (0) target = $region33
  $region32: #{tpu_custom_call.1} parent=0 // pred_region
    _
  $region33: #{tpu_custom_call.1} parent=0 // pred_fallthru
    _
  // Predicated region
  $region34: #{tpu_custom_call.1} parent=0 // pred_check
    _
  $region35: #{tpu_custom_call.1} parent=0 // pred_check_branch
    %226 = sbr.rel (0) target = $region37
  $region36: #{tpu_custom_call.1} parent=0 // pred_region
    _
  $region37: #{tpu_custom_call.1} parent=0 // pred_fallthru
    _

</llo_original>
